<compile_context>
chip_gen: v5e
topology: v5e:2x2
jax: 0.10.0
libtpu: 0.0.40
codegen_flags: <defaults>
</compile_context>

<pallas_src>
import jax
import jax.numpy as jnp
from jax.experimental import pallas as pl
from jax.experimental.pallas import tpu as pltpu


_LANES = 512              # lane-dense output width (multiple of 128)
_MAX_TILE_ROWS = 512      # 512x512xf32 = 1 MiB per operand block
_PALLAS_MIN_ELEMENTS = 4096   # below this, plain fused jnp is strictly faster


def _round_up(x, m):
    return (x + m - 1) // m * m


def _balance_weight_kernel(w_ref, lc_ref, le_ref, out_ref):
    # w_ref: SMEM (1,1) scalar weight; lc/le/out: VMEM (TR, LANES) tiles.
    w = w_ref[0, 0]
    one_minus_w = 1.0 - w
    out_ref[...] = w * lc_ref[...] + one_minus_w * le_ref[...]


def _balance_forward(weight, loss_con, loss_equ):
    lc = jnp.asarray(loss_con, jnp.float32)
    le = jnp.asarray(loss_equ, jnp.float32)
    assert lc.shape == le.shape, "loss_con / loss_equ must have matching shapes"
    w = jnp.asarray(weight, jnp.float32)

    orig_shape = lc.shape
    n = lc.size

    # --- Fast path: scalar / tiny losses (the actual training-loop case). ---
    # A Pallas launch here is pure overhead; let XLA fuse the 3 VPU ops.
    if n < _PALLAS_MIN_ELEMENTS:
        return (w * lc + (1.0 - w) * le).reshape(orig_shape)

    # --- Pallas path: lane-dense (rows, 512) slab, row-tiled grid. ---
    rows = pl.cdiv(n, _LANES)
    if rows <= _MAX_TILE_ROWS:
        tr = max(8, _round_up(rows, 8))      # single row-tile, 8-divisible
    else:
        tr = _MAX_TILE_ROWS
    rows_padded = _round_up(rows, tr)
    n_padded = rows_padded * _LANES

    lc_flat = lc.reshape(-1)
    le_flat = le.reshape(-1)
    if n_padded != n:
        lc_flat = jnp.pad(lc_flat, (0, n_padded - n))
        le_flat = jnp.pad(le_flat, (0, n_padded - n))
    lc2 = lc_flat.reshape(rows_padded, _LANES)
    le2 = le_flat.reshape(rows_padded, _LANES)
    w2 = w.reshape(1, 1)

    out2 = pl.pallas_call(
        _balance_weight_kernel,
        out_shape=jax.ShapeDtypeStruct((rows_padded, _LANES), jnp.float32),
        grid=(rows_padded // tr,),
        in_specs=[
            pl.BlockSpec(memory_space=pltpu.SMEM),            # scalar weight
            pl.BlockSpec((tr, _LANES), lambda i: (i, 0)),     # loss_con tile
            pl.BlockSpec((tr, _LANES), lambda i: (i, 0)),     # loss_equ tile
        ],
        out_specs=pl.BlockSpec((tr, _LANES), lambda i: (i, 0)),
        input_output_aliases={1: 0},   # reuse loss_con slab as output buffer
        compiler_params=pltpu.CompilerParams(
            dimension_semantics=("parallel",)),
    )(w2, lc2, le2)

    return out2.reshape(-1)[:n].reshape(orig_shape)


# --- Differentiable wrapper so the learnable `weight` actually trains. ---
@jax.custom_vjp
def balance_weight_apply(weight, loss_con, loss_equ):
    """total_loss = weight * loss_con + (1 - weight) * loss_equ"""
    return _balance_forward(weight, loss_con, loss_equ)


def _balance_fwd(weight, loss_con, loss_equ):
    out = _balance_forward(weight, loss_con, loss_equ)
    return out, (weight, loss_con, loss_equ)


def _balance_bwd(res, g):
    weight, lc, le = res
    w = jnp.asarray(weight, jnp.float32)
    gf = jnp.asarray(g, jnp.float32)
    lcf = jnp.asarray(lc, jnp.float32)
    lef = jnp.asarray(le, jnp.float32)
    d_w = jnp.sum(gf * (lcf - lef))
    d_lc = w * gf
    d_le = (1.0 - w) * gf
    d_w = d_w.astype(jnp.asarray(weight).dtype).reshape(jnp.shape(weight))
    d_lc = d_lc.astype(jnp.asarray(lc).dtype).reshape(jnp.shape(lc))
    d_le = d_le.astype(jnp.asarray(le).dtype).reshape(jnp.shape(le))
    return d_w, d_lc, d_le


balance_weight_apply.defvjp(_balance_fwd, _balance_bwd)


if __name__ == "__main__":
    # Learnable parameter init (matches torch.tensor(0.5)).
    weight = jnp.float32(0.5)

    key = jax.random.PRNGKey(0)
    k1, k2 = jax.random.split(key)

    # 1) Training-loop case: scalar losses (fused jnp fast path).
    loss_con = jax.random.uniform(k1, (), jnp.float32) * 2.0
    loss_equ = jax.random.uniform(k2, (), jnp.float32) * 2.0
    total_loss = jax.block_until_ready(
        balance_weight_apply(weight, loss_con, loss_equ))
    ref = weight * loss_con + (1.0 - weight) * loss_equ
    assert jnp.allclose(total_loss, ref, rtol=1e-6, atol=1e-6), (total_loss, ref)

    # Gradient w.r.t. the learnable weight: d/dw = loss_con - loss_equ.
    dw = jax.grad(lambda w: balance_weight_apply(w, loss_con, loss_equ))(weight)
    assert jnp.allclose(dw, loss_con - loss_equ, rtol=1e-6, atol=1e-6), dw

    # 2) Small per-sample loss vectors (still the fused jnp path).
    lc_small = jax.random.normal(k1, (2, 8), jnp.float32)
    le_small = jax.random.normal(k2, (2, 8), jnp.float32)
    out_small = jax.block_until_ready(
        balance_weight_apply(weight, lc_small, le_small))
    ref_small = weight * lc_small + (1.0 - weight) * le_small
    assert jnp.allclose(out_small, ref_small, rtol=1e-6, atol=1e-6)

    # 3) Larger elementwise losses -> row-tiled, lane-dense Pallas kernel.
    lc_big = jax.random.normal(k1, (32, 256), jnp.float32)    # 8192 elements
    le_big = jax.random.normal(k2, (32, 256), jnp.float32)
    out_big = jax.block_until_ready(
        balance_weight_apply(weight, lc_big, le_big))
    ref_big = weight * lc_big + (1.0 - weight) * le_big
    assert jnp.allclose(out_big, ref_big, rtol=1e-5, atol=1e-6)

    # Same path under jit (exercises the input/output aliasing for real).
    out_jit = jax.block_until_ready(
        jax.jit(balance_weight_apply)(weight, lc_big, le_big))
    assert jnp.allclose(out_jit, ref_big, rtol=1e-5, atol=1e-6)

    print("KERNEL_OK")
</pallas_src>

<mosaic_0001>
module attributes {stable_mosaic.version = 11 : i64} {
  func.func @_balance_weight_kernel(%arg0: i32, %arg1: memref<1x1xf32, #tpu.memory_space<smem>>, %arg2: memref<16x512xf32, #tpu.memory_space<vmem>>, %arg3: memref<16x512xf32, #tpu.memory_space<vmem>>, %arg4: memref<16x512xf32, #tpu.memory_space<vmem>>) attributes {dimension_semantics = [#tpu.dimension_semantics<parallel>], iteration_bounds = array<i64: 1>, scalar_prefetch = 0 : i64, scratch_operands = 0 : i64, tpu.core_type = #tpu.core_type<tc>, window_params = [{transform_indices = @transform_0, window_bounds = array<i64: 1, 1>}, {transform_indices = @transform_1, window_bounds = array<i64: 16, 512>}, {transform_indices = @transform_2, window_bounds = array<i64: 16, 512>}, {transform_indices = @transform_3, window_bounds = array<i64: 16, 512>}]} {
    %c0 = arith.constant 0 : index
    %c0_0 = arith.constant 0 : index
    %0 = memref.load %arg1[%c0, %c0_0] : memref<1x1xf32, #tpu.memory_space<smem>>
    %cst = arith.constant 1.000000e+00 : f32
    %1 = arith.subf %cst, %0 : f32
    %c0_1 = arith.constant 0 : index
    %c0_2 = arith.constant 0 : index
    %2 = vector.load %arg2[%c0_1, %c0_2] : memref<16x512xf32, #tpu.memory_space<vmem>>, vector<16x512xf32>
    %3 = vector.broadcast %0 : f32 to vector<16x512xf32>
    %4 = arith.mulf %3, %2 : vector<16x512xf32>
    %c0_3 = arith.constant 0 : index
    %c0_4 = arith.constant 0 : index
    %5 = vector.load %arg3[%c0_3, %c0_4] : memref<16x512xf32, #tpu.memory_space<vmem>>, vector<16x512xf32>
    %6 = vector.broadcast %1 : f32 to vector<16x512xf32>
    %7 = arith.mulf %6, %5 : vector<16x512xf32>
    %8 = arith.addf %4, %7 : vector<16x512xf32>
    %c0_5 = arith.constant 0 : index
    %c0_6 = arith.constant 0 : index
    %9 = vector.load %arg4[%c0_5, %c0_6] : memref<16x512xf32, #tpu.memory_space<vmem>>, vector<16x512xf32>
    tpu.vector_store %arg4[%c0_5, %c0_6], %8 {strides = array<i32>} : memref<16x512xf32, #tpu.memory_space<vmem>>, vector<16x512xf32>,
    return
  }
  func.func @transform_0(%arg0: i32) -> (i32, i32) {
    %c0_i32 = arith.constant 0 : i32
    %c0_i32_0 = arith.constant 0 : i32
    %c0_i32_1 = arith.constant 0 : i32
    return %c0_i32, %c0_i32_0 : i32, i32
  }
  func.func @transform_1(%arg0: i32) -> (i32, i32) {
    %c0_i32 = arith.constant 0 : i32
    %c0_i32_0 = arith.constant 0 : i32
    return %arg0, %c0_i32 : i32, i32
  }
  func.func @transform_2(%arg0: i32) -> (i32, i32) {
    %c0_i32 = arith.constant 0 : i32
    %c0_i32_0 = arith.constant 0 : i32
    return %arg0, %c0_i32 : i32, i32
  }
  func.func @transform_3(%arg0: i32) -> (i32, i32) {
    %c0_i32 = arith.constant 0 : i32
    %c0_i32_0 = arith.constant 0 : i32
    return %arg0, %c0_i32 : i32, i32
  }
}

</mosaic_0001>

<llo_original>
// kernel: tpu_custom_call.1
$region0: #{tpu_custom_call.1}
  #allocation0 [shape = 'u32[]', space=smem, size = 0x4, offset = 0x4, fixed_abs, tag = 'smem constant byte address 0x4 - core index']
  #allocation1 [shape = 'u32[72,128]{1,0:T(1,128)}', space=vmem, size = 0x9000, scoped, tag = 'internal scratch']
  #allocation2 [shape = 'f32[1,1]{1,0:T(1,128)S(6)}', space=smem, size = 0x200, scoped, tag = 'scoped memory for tpu_custom_call.1']
  %s0 = inlined_call_operand.<no memory space> [shape: f32[1,1], index: 0, kind: input, shape index: {}]
  %s1 = inlined_call_operand.hbm [shape: f32[16,512], index: 1, kind: input, shape index: {}, may-alias: {1,3}]
  %s2 = inlined_call_operand.vmem [shape: f32[16,512], index: 2, kind: input, shape index: {}]
  %s3 = inlined_call_operand.hbm [shape: f32[16,512], index: 3, kind: output, shape index: {}, may-alias: {1,3}]
  %s4 = sld [smem:[#allocation0]]
  $region26: #{tpu_custom_call.1} parent=0
    _
  %s6 = ssub.s32 1, %s4
  %s7 = scalar_select 0, %s6, %s4
  %8 = sst [smem:[#allocation2]] %s0
  $region1: #{tpu_custom_call.1} parent=0
    #allocation3 [shape = 'u8[32768]{0}', space=vmem, size = 0x8000, scoped, tag = 'input window, operand 1, single buffered']
    #allocation4 [shape = 's32[1]{0}', space=sflag, size = 0x4, scoped, tag = 'scoped memory for tpu_custom_call.1']
    #allocation5 [shape = 's32[1]{0}', space=sflag, size = 0x4, scoped, tag = 'scoped memory for tpu_custom_call.1']
    #allocation6 [shape = 'u8[32768]{0}', space=vmem, size = 0x8000, scoped, tag = 'output window, operand 0, single buffered']
    %9 = vsyncpa [#allocation4], 0
    %10 = vsyncpa [#allocation5], 0
    // Predicated region
    $region2: #{tpu_custom_call.1} parent=1 // pred_check
      _
    $region3: #{tpu_custom_call.1} parent=1 // pred_check_branch
      %12 = sbr.rel (0) target = $region5
    $region4: #{tpu_custom_call.1} parent=1 // pred_region
      _
    $region5: #{tpu_custom_call.1} parent=1 // pred_fallthru
      _
    // Predicated region
    $region6: #{tpu_custom_call.1} parent=1 // pred_check
      _
    $region7: #{tpu_custom_call.1} parent=1 // pred_check_branch
      %14 = sbr.rel (0) target = $region9
    $region8: #{tpu_custom_call.1} parent=1 // pred_region
      %16 = vsyncadd [#allocation4], 0
      %s17 = sshll.u32 %s1, 4
      %s18 = int_to_ptr.hbm [resolvable:$true] %s17
      %s19 = sshll.u32 [#allocation3], 4
      %s20 = int_to_ptr.vmem [resolvable:$true] %s19
      %25 = dma.hbm_to_vmem [thread:$0]  %s18, 1024, %s20, [#allocation4], 512, 512, 32
    $region9: #{tpu_custom_call.1} parent=1 // pred_fallthru
      _
    // Predicated region
    $region10: #{tpu_custom_call.1} parent=1 // pred_check
      _
    $region11: #{tpu_custom_call.1} parent=1 // pred_check_branch
      %27 = sbr.rel (0) target = $region13
    $region12: #{tpu_custom_call.1} parent=1 // pred_region
      _
    $region13: #{tpu_custom_call.1} parent=1 // pred_fallthru
      _
    // Predicated region
    $region14: #{tpu_custom_call.1} parent=1 // pred_check
      _
    $region15: #{tpu_custom_call.1} parent=1 // pred_check_branch
      %29 = sbr.rel (0) target = $region17
    $region16: #{tpu_custom_call.1} parent=1 // pred_region
      %31 = dma.done [#allocation4], 1024
    $region17: #{tpu_custom_call.1} parent=1 // pred_fallthru
      _
    %s32 = sld [smem:[#allocation2]]
    %s33 = ssub.f32 1.0, %s32
    %v34 = vld [vmem:[#allocation3] sm:$0xff]
    %v35 = vld [vmem:[#allocation3 + $0x8] sm:$0xff]
    %v36 = vld [vmem:[#allocation3 + $0x10] sm:$0xff]
    %v37 = vld [vmem:[#allocation3 + $0x18] sm:$0xff]
    %v38 = vld [vmem:[#allocation3 + $0x20] sm:$0xff]
    %v39 = vld [vmem:[#allocation3 + $0x28] sm:$0xff]
    %v40 = vld [vmem:[#allocation3 + $0x30] sm:$0xff]
    %v41 = vld [vmem:[#allocation3 + $0x38] sm:$0xff]
    %v42 = vstv %s32
    %v43 = vmul.f32 %v42, %v34
    %v44 = vmul.f32 %v42, %v35
    %v45 = vmul.f32 %v42, %v36
    %v46 = vmul.f32 %v42, %v37
    %v47 = vmul.f32 %v42, %v38
    %v48 = vmul.f32 %v42, %v39
    %v49 = vmul.f32 %v42, %v40
    %v50 = vmul.f32 %v42, %v41
    %v51 = vld [vmem:[%s2] sm:$0xff]
    %v52 = vld [vmem:[%s2 + $0x8] sm:$0xff]
    %v53 = vld [vmem:[%s2 + $0x10] sm:$0xff]
    %v54 = vld [vmem:[%s2 + $0x18] sm:$0xff]
    %v55 = vld [vmem:[%s2 + $0x20] sm:$0xff]
    %v56 = vld [vmem:[%s2 + $0x28] sm:$0xff]
    %v57 = vld [vmem:[%s2 + $0x30] sm:$0xff]
    %v58 = vld [vmem:[%s2 + $0x38] sm:$0xff]
    %v59 = vstv %s33
    %v60 = vmul.f32 %v59, %v51
    %v61 = vmul.f32 %v59, %v52
    %v62 = vmul.f32 %v59, %v53
    %v63 = vmul.f32 %v59, %v54
    %v64 = vmul.f32 %v59, %v55
    %v65 = vmul.f32 %v59, %v56
    %v66 = vmul.f32 %v59, %v57
    %v67 = vmul.f32 %v59, %v58
    %v68 = vadd.f32 %v43, %v60
    %v69 = vadd.f32 %v44, %v61
    %v70 = vadd.f32 %v45, %v62
    %v71 = vadd.f32 %v46, %v63
    %v72 = vadd.f32 %v47, %v64
    %v73 = vadd.f32 %v48, %v65
    %v74 = vadd.f32 %v49, %v66
    %v75 = vadd.f32 %v50, %v67
    %76 = vst [vmem:[#allocation6] sm:$0xff] %v68
    %77 = vst [vmem:[#allocation6 + $0x8] sm:$0xff] %v69
    %78 = vst [vmem:[#allocation6 + $0x10] sm:$0xff] %v70
    %79 = vst [vmem:[#allocation6 + $0x18] sm:$0xff] %v71
    %80 = vst [vmem:[#allocation6 + $0x20] sm:$0xff] %v72
    %81 = vst [vmem:[#allocation6 + $0x28] sm:$0xff] %v73
    %82 = vst [vmem:[#allocation6 + $0x30] sm:$0xff] %v74
    %83 = vst [vmem:[#allocation6 + $0x38] sm:$0xff] %v75
    // Predicated region
    $region18: #{tpu_custom_call.1} parent=1 // pred_check
      _
    $region19: #{tpu_custom_call.1} parent=1 // pred_check_branch
      %85 = sbr.rel (0) target = $region21
    $region20: #{tpu_custom_call.1} parent=1 // pred_region
      %87 = vsyncadd [#allocation5], 0
      %s88 = sshll.u32 [#allocation6], 4
      %s89 = int_to_ptr.vmem [resolvable:$true] %s88
      %s90 = sshll.u32 %s3, 4
      %s91 = int_to_ptr.hbm [resolvable:$true] %s90
      %96 = dma.vmem_to_hbm [thread:$0]  %s89, 1024, %s91, [#allocation5], 512, 512, 32
    $region21: #{tpu_custom_call.1} parent=1 // pred_fallthru
      _
    // Predicated region
    $region22: #{tpu_custom_call.1} parent=1 // pred_check
      _
    $region23: #{tpu_custom_call.1} parent=1 // pred_check_branch
      %98 = sbr.rel (0) target = $region25
    $region24: #{tpu_custom_call.1} parent=1 // pred_region
      %100 = dma.done [#allocation5], 1024
    $region25: #{tpu_custom_call.1} parent=1 // pred_fallthru
      _
    %101 = vsyncpa [#allocation4], 1
    %102 = vsyncpa [#allocation5], 1

</llo_original>
